<compile_context>
chip_gen: v7x
topology: tpu7x:2x2x1
jax: 0.10.0
libtpu: 0.0.40
codegen_flags: <defaults>
</compile_context>

<pallas_src>
import jax
import jax.numpy as jnp
from jax import lax
from jax.experimental import pallas as pl
from jax.experimental.pallas import tpu as pltpu

# Hyperparameters from LabelContrastiveLoss.__init__ defaults (no learnable weights).
MARGIN = 0.2
LAMBDA_POS = 1.0
LAMBDA_NEG = 1.0
LAMBDA_REG = 0.1
LAMBDA_KL = 0.1
EPS = 1e-8  # F.cosine_similarity default eps


def _label_contrastive_kernel(x_ref, out_ref):
    # x_ref: (B, 4*D) packed as [img | txt | comb | neg] along the lane axis.
    x = x_ref[...]
    if x.dtype != jnp.float32:          # cast once at load (cheap on v5e too)
        x = x.astype(jnp.float32)

    b, d4 = x.shape
    d = d4 // 4
    inv_b = 1.0 / b
    inv_bd = 1.0 / (b * d)

    img = x[:, 0 * d:1 * d]
    txt = x[:, 1 * d:2 * d]
    comb = x[:, 2 * d:3 * d]
    neg = x[:, 3 * d:4 * d]

    # ---- cosine similarities (PyTorch semantics: clamp each norm at eps) ----
    # 1/max(||a||, eps) == rsqrt(max(sum(a*a), eps^2)); exact rsqrt keeps 1e-5 tol.
    def inv_norm(a):
        ssq = jnp.sum(a * a, axis=-1, keepdims=True)        # (B, 1)
        return lax.rsqrt(jnp.maximum(ssq, EPS * EPS))

    inv_n_img = inv_norm(img)                                # hoisted, reused 3x
    cos_pos = jnp.sum(comb * img, axis=-1, keepdims=True) * inv_norm(comb) * inv_n_img
    cos_orig = jnp.sum(txt * img, axis=-1, keepdims=True) * inv_norm(txt) * inv_n_img
    cos_neg = jnp.sum(neg * img, axis=-1, keepdims=True) * inv_norm(neg) * inv_n_img

    # ---- hinge terms (per row) ----
    improve = jnp.maximum(cos_orig + MARGIN - cos_pos, 0.0)  # (B, 1)
    negterm = jnp.maximum(cos_pos - cos_neg + MARGIN, 0.0)   # (B, 1)

    # ---- MSE(comb, txt) per row (mean over B*D applied in the weights below) ----
    diff = comb - txt
    reg_row = jnp.sum(diff * diff, axis=-1, keepdims=True)   # (B, 1)

    # ---- KL(softmax(txt) || softmax(comb)), reduction='batchmean' ----
    comb_shift = comb - jnp.max(comb, axis=-1, keepdims=True)
    log_p = comb_shift - jnp.log(jnp.sum(jnp.exp(comb_shift), axis=-1, keepdims=True))
    txt_shift = txt - jnp.max(txt, axis=-1, keepdims=True)
    e_txt = jnp.exp(txt_shift)
    denom = jnp.sum(e_txt, axis=-1, keepdims=True)
    log_denom = jnp.log(denom)
    q = e_txt * pl.reciprocal(denom)                          # exact reciprocal
    log_q = txt_shift - log_denom
    kl_row = jnp.sum(q * (log_q - log_p), axis=-1, keepdims=True)  # (B, 1)

    # ---- fold all terms, single sublane reduction at the end ----
    per_row = ((LAMBDA_POS * improve + LAMBDA_NEG * negterm + LAMBDA_KL * kl_row) * inv_b
               + LAMBDA_REG * reg_row * inv_bd)               # (B, 1)

    out_ref[0, 0] = jnp.sum(per_row)                          # scalar -> SMEM


def label_contrastive_loss(image_features, text_features,
                           combined_features, combined_features_neg):
    """Returns total_loss as a scalar (return_dict=False semantics)."""
    # Pack the 4 (B, D) operands into one lane-dense (B, 4*D) operand: 1 DMA,
    # full vreg lane utilization at D=32 (4*D = 128 lanes).
    x = jnp.concatenate(
        [image_features, text_features, combined_features, combined_features_neg],
        axis=-1)
    b, d4 = x.shape
    d = d4 // 4

    cost = pl.CostEstimate(
        flops=30 * b * d,                 # dots, sums of squares, MSE, KL elementwise
        transcendentals=2 * b * d + 8 * b,  # exp for both softmaxes + logs/rsqrt per row
        bytes_accessed=x.size * x.dtype.itemsize + 4,
    )

    out = pl.pallas_call(
        _label_contrastive_kernel,
        out_shape=jax.ShapeDtypeStruct((1, 1), jnp.float32),
        in_specs=[pl.BlockSpec(memory_space=pltpu.MemorySpace.VMEM)],
        out_specs=pl.BlockSpec(memory_space=pltpu.MemorySpace.SMEM),
        cost_estimate=cost,
        # No grid: B=8 x 4*D=128 is a single vreg; a grid would only add
        # serial per-step overhead on one TensorCore.
    )(x)
    return out[0, 0]


def _reference_loss(img, txt, comb, neg):
    def cos(a, c):
        na = jnp.maximum(jnp.linalg.norm(a, axis=-1), EPS)
        nc = jnp.maximum(jnp.linalg.norm(c, axis=-1), EPS)
        return jnp.sum(a * c, axis=-1) / (na * nc)

    cos_pos = cos(comb, img)
    cos_orig = cos(txt, img)
    cos_neg = cos(neg, img)
    loss_improve = jnp.mean(jnp.maximum(cos_orig + MARGIN - cos_pos, 0.0))
    loss_neg = jnp.mean(jnp.maximum(cos_pos - cos_neg + MARGIN, 0.0))
    loss_reg = jnp.mean((comb - txt) ** 2)
    log_p = jax.nn.log_softmax(comb, axis=-1)
    q = jax.nn.softmax(txt, axis=-1)
    loss_kl = jnp.sum(q * (jnp.log(q) - log_p)) / img.shape[0]
    return (LAMBDA_POS * loss_improve + LAMBDA_NEG * loss_neg
            + LAMBDA_REG * loss_reg + LAMBDA_KL * loss_kl)


if __name__ == "__main__":
    B, D = 8, 32  # small shapes: batch=8, hidden=32 (packed -> (8, 128))
    key = jax.random.PRNGKey(0)
    k1, k2, k3, k4 = jax.random.split(key, 4)
    image_features = jax.random.normal(k1, (B, D), dtype=jnp.float32)
    text_features = jax.random.normal(k2, (B, D), dtype=jnp.float32)
    combined_features = jax.random.normal(k3, (B, D), dtype=jnp.float32)
    combined_features_neg = jax.random.normal(k4, (B, D), dtype=jnp.float32)

    total = label_contrastive_loss(image_features, text_features,
                                   combined_features, combined_features_neg)
    total = jax.block_until_ready(total)

    ref = _reference_loss(image_features, text_features,
                          combined_features, combined_features_neg)
    assert jnp.allclose(total, ref, rtol=1e-5, atol=1e-5), (total, ref)

    print("KERNEL_OK")
</pallas_src>

<mosaic_0001>
module attributes {stable_mosaic.version = 11 : i64} {
  func.func @_label_contrastive_kernel(%arg0: memref<8x128xf32, #tpu.memory_space<vmem>>, %arg1: memref<1x1xf32, #tpu.memory_space<smem>>) attributes {dimension_semantics = [], scalar_prefetch = 0 : i64, scratch_operands = 0 : i64, tpu.core_type = #tpu.core_type<tc>} {
    %c0 = arith.constant 0 : index
    %c0_0 = arith.constant 0 : index
    %0 = vector.load %arg0[%c0, %c0_0] : memref<8x128xf32, #tpu.memory_space<vmem>>, vector<8x128xf32>
    %1 = vector.extract_strided_slice %0 {offsets = [0, 0], sizes = [8, 32], strides = [1, 1]} : vector<8x128xf32> to vector<8x32xf32>
    %2 = vector.extract_strided_slice %0 {offsets = [0, 32], sizes = [8, 32], strides = [1, 1]} : vector<8x128xf32> to vector<8x32xf32>
    %3 = vector.extract_strided_slice %0 {offsets = [0, 64], sizes = [8, 32], strides = [1, 1]} : vector<8x128xf32> to vector<8x32xf32>
    %4 = vector.extract_strided_slice %0 {offsets = [0, 96], sizes = [8, 32], strides = [1, 1]} : vector<8x128xf32> to vector<8x32xf32>
    %5 = arith.mulf %1, %1 : vector<8x32xf32>
    %cst = arith.constant dense<0.000000e+00> : vector<8xf32>
    %6 = vector.multi_reduction <add>, %5, %cst [1] : vector<8x32xf32> to vector<8xf32>
    %7 = vector.shape_cast %6 : vector<8xf32> to vector<8x1xf32>
    %cst_1 = arith.constant 1.000000e-16 : f32
    %8 = vector.broadcast %cst_1 : f32 to vector<8x1xf32>
    %9 = arith.maximumf %7, %8 : vector<8x1xf32>
    %10 = math.rsqrt %9 : vector<8x1xf32>
    %11 = arith.mulf %3, %1 : vector<8x32xf32>
    %cst_2 = arith.constant dense<0.000000e+00> : vector<8xf32>
    %12 = vector.multi_reduction <add>, %11, %cst_2 [1] : vector<8x32xf32> to vector<8xf32>
    %13 = vector.shape_cast %12 : vector<8xf32> to vector<8x1xf32>
    %14 = arith.mulf %3, %3 : vector<8x32xf32>
    %cst_3 = arith.constant dense<0.000000e+00> : vector<8xf32>
    %15 = vector.multi_reduction <add>, %14, %cst_3 [1] : vector<8x32xf32> to vector<8xf32>
    %16 = vector.shape_cast %15 : vector<8xf32> to vector<8x1xf32>
    %cst_4 = arith.constant 1.000000e-16 : f32
    %17 = vector.broadcast %cst_4 : f32 to vector<8x1xf32>
    %18 = arith.maximumf %16, %17 : vector<8x1xf32>
    %19 = math.rsqrt %18 : vector<8x1xf32>
    %20 = arith.mulf %13, %19 : vector<8x1xf32>
    %21 = arith.mulf %20, %10 : vector<8x1xf32>
    %22 = arith.mulf %2, %1 : vector<8x32xf32>
    %cst_5 = arith.constant dense<0.000000e+00> : vector<8xf32>
    %23 = vector.multi_reduction <add>, %22, %cst_5 [1] : vector<8x32xf32> to vector<8xf32>
    %24 = vector.shape_cast %23 : vector<8xf32> to vector<8x1xf32>
    %25 = arith.mulf %2, %2 : vector<8x32xf32>
    %cst_6 = arith.constant dense<0.000000e+00> : vector<8xf32>
    %26 = vector.multi_reduction <add>, %25, %cst_6 [1] : vector<8x32xf32> to vector<8xf32>
    %27 = vector.shape_cast %26 : vector<8xf32> to vector<8x1xf32>
    %cst_7 = arith.constant 1.000000e-16 : f32
    %28 = vector.broadcast %cst_7 : f32 to vector<8x1xf32>
    %29 = arith.maximumf %27, %28 : vector<8x1xf32>
    %30 = math.rsqrt %29 : vector<8x1xf32>
    %31 = arith.mulf %24, %30 : vector<8x1xf32>
    %32 = arith.mulf %31, %10 : vector<8x1xf32>
    %33 = arith.mulf %4, %1 : vector<8x32xf32>
    %cst_8 = arith.constant dense<0.000000e+00> : vector<8xf32>
    %34 = vector.multi_reduction <add>, %33, %cst_8 [1] : vector<8x32xf32> to vector<8xf32>
    %35 = vector.shape_cast %34 : vector<8xf32> to vector<8x1xf32>
    %36 = arith.mulf %4, %4 : vector<8x32xf32>
    %cst_9 = arith.constant dense<0.000000e+00> : vector<8xf32>
    %37 = vector.multi_reduction <add>, %36, %cst_9 [1] : vector<8x32xf32> to vector<8xf32>
    %38 = vector.shape_cast %37 : vector<8xf32> to vector<8x1xf32>
    %cst_10 = arith.constant 1.000000e-16 : f32
    %39 = vector.broadcast %cst_10 : f32 to vector<8x1xf32>
    %40 = arith.maximumf %38, %39 : vector<8x1xf32>
    %41 = math.rsqrt %40 : vector<8x1xf32>
    %42 = arith.mulf %35, %41 : vector<8x1xf32>
    %43 = arith.mulf %42, %10 : vector<8x1xf32>
    %cst_11 = arith.constant 2.000000e-01 : f32
    %44 = vector.broadcast %cst_11 : f32 to vector<8x1xf32>
    %45 = arith.addf %32, %44 : vector<8x1xf32>
    %46 = arith.subf %45, %21 : vector<8x1xf32>
    %cst_12 = arith.constant 0.000000e+00 : f32
    %47 = vector.broadcast %cst_12 : f32 to vector<8x1xf32>
    %48 = arith.maximumf %46, %47 : vector<8x1xf32>
    %49 = arith.subf %21, %43 : vector<8x1xf32>
    %cst_13 = arith.constant 2.000000e-01 : f32
    %50 = vector.broadcast %cst_13 : f32 to vector<8x1xf32>
    %51 = arith.addf %49, %50 : vector<8x1xf32>
    %cst_14 = arith.constant 0.000000e+00 : f32
    %52 = vector.broadcast %cst_14 : f32 to vector<8x1xf32>
    %53 = arith.maximumf %51, %52 : vector<8x1xf32>
    %54 = arith.subf %3, %2 : vector<8x32xf32>
    %55 = arith.mulf %54, %54 : vector<8x32xf32>
    %cst_15 = arith.constant dense<0.000000e+00> : vector<8xf32>
    %56 = vector.multi_reduction <add>, %55, %cst_15 [1] : vector<8x32xf32> to vector<8xf32>
    %57 = vector.shape_cast %56 : vector<8xf32> to vector<8x1xf32>
    %cst_16 = arith.constant dense<0xFF800000> : vector<8xf32>
    %58 = vector.multi_reduction <maximumf>, %3, %cst_16 [1] : vector<8x32xf32> to vector<8xf32>
    %59 = vector.shape_cast %58 : vector<8xf32> to vector<8x1xf32>
    %60 = vector.broadcast %59 : vector<8x1xf32> to vector<8x32xf32>
    %61 = arith.subf %3, %60 : vector<8x32xf32>
    %62 = math.exp %61 : vector<8x32xf32>
    %cst_17 = arith.constant dense<0.000000e+00> : vector<8xf32>
    %63 = vector.multi_reduction <add>, %62, %cst_17 [1] : vector<8x32xf32> to vector<8xf32>
    %64 = vector.shape_cast %63 : vector<8xf32> to vector<8x1xf32>
    %65 = math.log %64 : vector<8x1xf32>
    %66 = vector.broadcast %65 : vector<8x1xf32> to vector<8x32xf32>
    %67 = arith.subf %61, %66 : vector<8x32xf32>
    %cst_18 = arith.constant dense<0xFF800000> : vector<8xf32>
    %68 = vector.multi_reduction <maximumf>, %2, %cst_18 [1] : vector<8x32xf32> to vector<8xf32>
    %69 = vector.shape_cast %68 : vector<8xf32> to vector<8x1xf32>
    %70 = vector.broadcast %69 : vector<8x1xf32> to vector<8x32xf32>
    %71 = arith.subf %2, %70 : vector<8x32xf32>
    %72 = math.exp %71 : vector<8x32xf32>
    %cst_19 = arith.constant dense<0.000000e+00> : vector<8xf32>
    %73 = vector.multi_reduction <add>, %72, %cst_19 [1] : vector<8x32xf32> to vector<8xf32>
    %74 = vector.shape_cast %73 : vector<8xf32> to vector<8x1xf32>
    %75 = math.log %74 : vector<8x1xf32>
    %76 = tpu.reciprocal %74 : vector<8x1xf32> -> vector<8x1xf32>
    %77 = vector.broadcast %76 : vector<8x1xf32> to vector<8x32xf32>
    %78 = arith.mulf %72, %77 : vector<8x32xf32>
    %79 = vector.broadcast %75 : vector<8x1xf32> to vector<8x32xf32>
    %80 = arith.subf %71, %79 : vector<8x32xf32>
    %81 = arith.subf %80, %67 : vector<8x32xf32>
    %82 = arith.mulf %78, %81 : vector<8x32xf32>
    %cst_20 = arith.constant dense<0.000000e+00> : vector<8xf32>
    %83 = vector.multi_reduction <add>, %82, %cst_20 [1] : vector<8x32xf32> to vector<8xf32>
    %84 = vector.shape_cast %83 : vector<8xf32> to vector<8x1xf32>
    %cst_21 = arith.constant 1.000000e+00 : f32
    %85 = vector.broadcast %cst_21 : f32 to vector<8x1xf32>
    %86 = arith.mulf %85, %48 : vector<8x1xf32>
    %cst_22 = arith.constant 1.000000e+00 : f32
    %87 = vector.broadcast %cst_22 : f32 to vector<8x1xf32>
    %88 = arith.mulf %87, %53 : vector<8x1xf32>
    %89 = arith.addf %86, %88 : vector<8x1xf32>
    %cst_23 = arith.constant 1.000000e-01 : f32
    %90 = vector.broadcast %cst_23 : f32 to vector<8x1xf32>
    %91 = arith.mulf %90, %84 : vector<8x1xf32>
    %92 = arith.addf %89, %91 : vector<8x1xf32>
    %cst_24 = arith.constant 1.250000e-01 : f32
    %93 = vector.broadcast %cst_24 : f32 to vector<8x1xf32>
    %94 = arith.mulf %92, %93 : vector<8x1xf32>
    %cst_25 = arith.constant 1.000000e-01 : f32
    %95 = vector.broadcast %cst_25 : f32 to vector<8x1xf32>
    %96 = arith.mulf %95, %57 : vector<8x1xf32>
    %cst_26 = arith.constant 3.906250e-03 : f32
    %97 = vector.broadcast %cst_26 : f32 to vector<8x1xf32>
    %98 = arith.mulf %96, %97 : vector<8x1xf32>
    %99 = arith.addf %94, %98 : vector<8x1xf32>
    %100 = vector.shape_cast %99 : vector<8x1xf32> to vector<1x8x1xf32>
    %cst_27 = arith.constant dense<0.000000e+00> : vector<1xf32>
    %101 = vector.multi_reduction <add>, %100, %cst_27 [1, 2] : vector<1x8x1xf32> to vector<1xf32>
    %102 = vector.shape_cast %101 : vector<1xf32> to vector<1x1x1xf32>
    %103 = vector.extract %102[0, 0, 0] : f32 from vector<1x1x1xf32>
    %c0_28 = arith.constant 0 : index
    %c0_29 = arith.constant 0 : index
    %104 = memref.load %arg1[%c0_28, %c0_29] : memref<1x1xf32, #tpu.memory_space<smem>>
    memref.store %103, %arg1[%c0_28, %c0_29] : memref<1x1xf32, #tpu.memory_space<smem>>
    return
  }
}

</mosaic_0001>

<llo_original>
// kernel: tpu_custom_call.1
$region0: #{tpu_custom_call.1}
  #allocation0 [shape = 'u32[]', space=smem, size = 0x4, offset = 0x4, fixed_abs, tag = 'smem constant byte address 0x4 - core index']
  #allocation1 [shape = 'u32[144,128]{1,0:T(1,128)}', space=vmem, size = 0x12000, scoped, tag = 'internal scratch']
  %s0 = inlined_call_operand.hbm [shape: f32[8,128], index: 0, kind: input, shape index: {}]
  %s1 = inlined_call_operand.hbm [shape: f32[1,1], index: 1, kind: output, shape index: {}]
  %s2 = sld [smem:[#allocation0]]
  $region18: #{tpu_custom_call.1} parent=0
    _
  %s4 = ssub.s32 1, %s2
  %s5 = scalar_select 0, %s4, %s2
  $region1: #{tpu_custom_call.1} parent=0
    #allocation2 [shape = 'u8[4096]{0}', space=vmem, size = 0x1000, scoped, tag = 'input window, operand 0, single buffered']
    #allocation3 [shape = 's32[1]{0}', space=sflag, size = 0x4, scoped, tag = 'scoped memory for tpu_custom_call.1']
    #allocation4 [shape = 's32[1]{0}', space=sflag, size = 0x4, scoped, tag = 'scoped memory for tpu_custom_call.1']
    #allocation5 [shape = 'u8[512]{0}', space=smem, size = 0x200, scoped, tag = 'output window, operand 0, single buffered']
    %6 = vsyncpa [#allocation3], 0
    %7 = vsyncpa [#allocation4], 0
    // Predicated region
    $region2: #{tpu_custom_call.1} parent=1 // pred_check
      _
    $region3: #{tpu_custom_call.1} parent=1 // pred_check_branch
      %9 = sbr.rel (0) target = $region5
    $region4: #{tpu_custom_call.1} parent=1 // pred_region
      %s11 = ssub.s32 128, 128
      %12 = vsyncadd [#allocation3], %s11
      %s14 = sshll.u32 [#allocation2], 4
      %s15 = int_to_ptr.vmem [resolvable:$true] %s14
      %17 = dma.hbm_to_vmem [thread:$0]  %s0, 128, %s15, [#allocation3]
    $region5: #{tpu_custom_call.1} parent=1 // pred_fallthru
      _
    // Predicated region
    $region6: #{tpu_custom_call.1} parent=1 // pred_check
      _
    $region7: #{tpu_custom_call.1} parent=1 // pred_check_branch
      %19 = sbr.rel (0) target = $region9
    $region8: #{tpu_custom_call.1} parent=1 // pred_region
      %20 = dma.done [#allocation3], 128
    $region9: #{tpu_custom_call.1} parent=1 // pred_fallthru
      _
    %v21 = vld [vmem:[#allocation2] sm:$0xff]
    %v22 = vmul.f32 %v21, %v21
    %vm23 = vcmask 261120
    %v24 = vsel %vm23, %v22, 0.0
    %25 = vadd.xlane.f32.xlu0 %v24
    %v26 = vpop.xlane.xlu0 %25
    %v27 = vmax.f32 %v26, 1e-16
    %v28 = vrsqrt.pop %v27
    %30 = vrot.lane.b32.xlu0 %v21, 64
    %v31 = vpop.permute.xlu0 %30
    %v33 = vmul.f32 %v21, %v31
    %35 = vrot.lane.b32.xlu0 %v33, 64
    %v36 = vpop.permute.xlu0 %35
    %v38 = vsel %vm23, %v36, 0.0
    %39 = vadd.xlane.f32.xlu0 %v38
    %v40 = vpop.xlane.xlu0 %39
    %42 = vrot.lane.b32.xlu0 %v22, 64
    %v43 = vpop.permute.xlu0 %42
    %v45 = vsel %vm23, %v43, 0.0
    %46 = vadd.xlane.f32.xlu0 %v45
    %v47 = vpop.xlane.xlu0 %46
    %v48 = vmax.f32 %v47, 1e-16
    %v49 = vrsqrt.pop %v48
    %v50 = vmul.f32 %v40, %v49
    %v51 = vmul.f32 %v50, %v28
    %52 = vrot.lane.b32.xlu0 %v21, 32
    %v53 = vpop.permute.xlu0 %52
    %v55 = vmul.f32 %v21, %v53
    %57 = vrot.lane.b32.xlu0 %v55, 96
    %v58 = vpop.permute.xlu0 %57
    %v60 = vsel %vm23, %v58, 0.0
    %61 = vadd.xlane.f32.xlu0 %v60
    %v62 = vpop.xlane.xlu0 %61
    %63 = vrot.lane.b32.xlu0 %v22, 96
    %v64 = vpop.permute.xlu0 %63
    %v66 = vsel %vm23, %v64, 0.0
    %67 = vadd.xlane.f32.xlu0 %v66
    %v68 = vpop.xlane.xlu0 %67
    %v69 = vmax.f32 %v68, 1e-16
    %v70 = vrsqrt.pop %v69
    %v71 = vmul.f32 %v62, %v70
    %v72 = vmul.f32 %v71, %v28
    %73 = vrot.lane.b32.xlu0 %v21, 96
    %v74 = vpop.permute.xlu0 %73
    %v76 = vmul.f32 %v21, %v74
    %78 = vrot.lane.b32.xlu0 %v76, 32
    %v79 = vpop.permute.xlu0 %78
    %v81 = vsel %vm23, %v79, 0.0
    %82 = vadd.xlane.f32.xlu0 %v81
    %v83 = vpop.xlane.xlu0 %82
    %84 = vrot.lane.b32.xlu0 %v22, 32
    %v85 = vpop.permute.xlu0 %84
    %v87 = vsel %vm23, %v85, 0.0
    %88 = vadd.xlane.f32.xlu0 %v87
    %v89 = vpop.xlane.xlu0 %88
    %v90 = vmax.f32 %v89, 1e-16
    %v91 = vrsqrt.pop %v90
    %v92 = vmul.f32 %v83, %v91
    %v93 = vmul.f32 %v92, %v28
    %v94 = vadd.f32 %v72, 0.2
    %v95 = vsub.f32 %v94, %v51
    %v96 = vmax.f32 %v95, 0.0
    %v97 = vsub.f32 %v51, %v93
    %v98 = vadd.f32 %v97, 0.2
    %v99 = vmax.f32 %v98, 0.0
    %v100 = vsub.f32 %v21, %v53
    %v101 = vmul.f32 %v100, %v100
    %103 = vrot.lane.b32.xlu0 %v101, 64
    %v104 = vpop.permute.xlu0 %103
    %v106 = vsel %vm23, %v104, 0.0
    %107 = vadd.xlane.f32.xlu0 %v106
    %v108 = vpop.xlane.xlu0 %107
    %vm109 = vcmask 785920
    %v110 = vsel %vm109, %v21, -inf
    %111 = vmax.xlane.f32.xlu0 %v110
    %v112 = vpop.xlane.xlu0 %111
    %v113 = vsub.f32 %v21, %v112
    %v114 = vmul.f32 %v113, 1.442695
    %v115 = vpow.pop %v114
    %117 = vrot.lane.b32.xlu0 %v115, 64
    %v118 = vpop.permute.xlu0 %117
    %v120 = vsel %vm23, %v118, 0.0
    %121 = vadd.xlane.f32.xlu0 %v120
    %v122 = vpop.xlane.xlu0 %121
    %v123 = vlog2.pop %v122
    %v124 = vmul.f32 %v123, 0.6931472
    %v125 = vsub.f32 %v113, %v124
    %vm126 = vcmask 523520
    %v127 = vsel %vm126, %v21, -inf
    %128 = vmax.xlane.f32.xlu0 %v127
    %v129 = vpop.xlane.xlu0 %128
    %v130 = vsub.f32 %v21, %v129
    %v131 = vmul.f32 %v130, 1.442695
    %v132 = vpow.pop %v131
    %134 = vrot.lane.b32.xlu0 %v132, 96
    %v135 = vpop.permute.xlu0 %134
    %v137 = vsel %vm23, %v135, 0.0
    %138 = vadd.xlane.f32.xlu0 %v137
    %v139 = vpop.xlane.xlu0 %138
    %v140 = vlog2.pop %v139
    %v141 = vmul.f32 %v140, 0.6931472
    %v142 = vrcp.pop %v139
    %v143 = vmul.f32 %v132, %v142
    %v144 = vsub.f32 %v130, %v141
    %146 = vrot.lane.b32.xlu0 %v125, 96
    %v147 = vpop.permute.xlu0 %146
    %v149 = vsub.f32 %v144, %v147
    %v150 = vmul.f32 %v143, %v149
    %152 = vrot.lane.b32.xlu0 %v150, 96
    %v153 = vpop.permute.xlu0 %152
    %v155 = vsel %vm23, %v153, 0.0
    %156 = vadd.xlane.f32.xlu0 %v155
    %v157 = vpop.xlane.xlu0 %156
    %v158 = vadd.f32 %v96, %v99
    %v159 = vmul.f32 %v157, 0.1
    %v160 = vadd.f32 %v158, %v159
    %v161 = vmul.f32 %v160, 0.125
    %v162 = vmul.f32 %v108, 0.1
    %v163 = vmul.f32 %v162, 0.00390625
    %v164 = vadd.f32 %v161, %v163
    %vm165 = vcmask 7168
    %v166 = vsel %vm165, %v164, 0.0
    %167 = vadd.xlane.f32.xlu0 %v166
    %v168 = vpop.xlane.xlu0 %167
    %v169 = vrot.slane %v168, 4
    %v170 = vadd.f32 %v168, %v169
    %v171 = vrot.slane %v170, 2
    %v172 = vadd.f32 %v170, %v171
    %v173 = vrot.slane %v172, 1
    %v174 = vadd.f32 %v172, %v173
    %s175 = vtos %v174
    %s176 = scalar_lea.smem [#allocation5], 0
    %177 = sst [smem:[%s176]] %s175
    // Predicated region
    $region10: #{tpu_custom_call.1} parent=1 // pred_check
      _
    $region11: #{tpu_custom_call.1} parent=1 // pred_check_branch
      %179 = sbr.rel (0) target = $region13
    $region12: #{tpu_custom_call.1} parent=1 // pred_region
      %s181 = ssub.s32 16, 16
      %182 = vsyncadd [#allocation4], %s181
      %185 = dma.smem_to_hbm [#allocation5], 16, %s1, [#allocation4]
    $region13: #{tpu_custom_call.1} parent=1 // pred_fallthru
      _
    // Predicated region
    $region14: #{tpu_custom_call.1} parent=1 // pred_check
      _
    $region15: #{tpu_custom_call.1} parent=1 // pred_check_branch
      %187 = sbr.rel (0) target = $region17
    $region16: #{tpu_custom_call.1} parent=1 // pred_region
      %188 = dma.done [#allocation4], 16
    $region17: #{tpu_custom_call.1} parent=1 // pred_fallthru
      _
    %189 = sfence
    %190 = vsyncpa [#allocation3], 1
    %191 = vsyncpa [#allocation4], 1

</llo_original>
